<compile_context>
chip_gen: v5e
topology: v5e:2x2
jax: 0.10.0
libtpu: 0.0.40
codegen_flags: <defaults>
</compile_context>

<pallas_src>
import functools
import math

import jax
import jax.numpy as jnp
from jax import lax
from jax.experimental import pallas as pl
from jax.experimental.pallas import tpu as pltpu


_NEG_BIG = -1e30  # additive guard for padded kv columns (exp -> 0, no inf-inf NaNs)


def _rep_cols(x, n):
    """x: (rows, c) with every column holding the same per-row value -> (rows, n)."""
    rows, c = x.shape
    if n == c:
        return x
    if n % c == 0:
        return jnp.tile(x, (1, n // c))
    return jnp.broadcast_to(x[:, :1], (rows, n))


def _flash_body(q_ref, k_ref, v_ref, mask_ref, o_ref,
                qs_sc, m_sc, l_sc, acc_sc, *, scale, kv_len, bf16_exp):
    """One (tq, tk) online-softmax step for a single (batch, q-tile)."""
    ki = pl.program_id(2)
    tk = k_ref.shape[0]

    @pl.when(ki == 0)
    def _init():
        m_sc[...] = jnp.full_like(m_sc, -jnp.inf)
        l_sc[...] = jnp.zeros_like(l_sc)
        acc_sc[...] = jnp.zeros_like(acc_sc)
        if qs_sc is not None:
            # Scale hoisted out of the kv loop: computed once per (batch, q-tile).
            qs_sc[...] = q_ref[...] * jnp.asarray(scale, dtype=q_ref.dtype)

    q = qs_sc[...] if qs_sc is not None else q_ref[...]

    # (tq, tk) logits: native-dtype MXU operands, f32 accumulation (NT form).
    s = lax.dot_general(q, k_ref[...], (((1,), (1,)), ((), ())),
                        preferred_element_type=jnp.float32)

    if mask_ref is not None:
        # Module semantics: mask is MULTIPLIED into the (scaled) logits.
        s = s * mask_ref[...].astype(jnp.float32)

    if kv_len is not None:
        # Kill padded kv columns (wrapper-side padding, not user masking).
        col = ki * tk + lax.broadcasted_iota(jnp.int32, s.shape, 1)
        s = jnp.where(col < kv_len, s, _NEG_BIG)

    # Online softmax; f32 running stats kept lane-dense (tq, 128), replicated.
    m_prev = m_sc[...]
    m_new = jnp.maximum(m_prev, jnp.max(s, axis=-1, keepdims=True))
    alpha = jnp.exp(m_prev - m_new)

    diff = s - _rep_cols(m_new, s.shape[-1])
    if bf16_exp:
        p = jnp.exp(diff.astype(jnp.bfloat16))   # bf16 EUP path (v6e/v7x)
    else:
        p = jnp.exp(diff)                        # f32 path (v5e / f32 inputs)

    l_sc[...] = alpha * l_sc[...] + jnp.sum(p.astype(jnp.float32), axis=-1,
                                            keepdims=True)
    acc_sc[...] = _rep_cols(alpha, acc_sc.shape[-1]) * acc_sc[...] + lax.dot_general(
        p.astype(v_ref.dtype), v_ref[...], (((1,), (0,)), ((), ())),
        preferred_element_type=jnp.float32)
    m_sc[...] = m_new

    @pl.when(ki == pl.num_programs(2) - 1)
    def _finalize():
        approx = o_ref.dtype != jnp.float32     # exact reciprocal for f32 outputs
        inv_l = pl.reciprocal(l_sc[...], approx=approx)
        o_ref[...] = (acc_sc[...] * _rep_cols(inv_l, acc_sc.shape[-1])
                      ).astype(o_ref.dtype)


def _make_kernel(has_mask, has_scale, scale, kv_len, bf16_exp):
    def kernel(*refs):
        q_ref, k_ref, v_ref = refs[0], refs[1], refs[2]
        i = 3
        mask_ref = None
        if has_mask:
            mask_ref = refs[i]; i += 1
        o_ref = refs[i]; i += 1
        qs_sc = None
        if has_scale:
            qs_sc = refs[i]; i += 1
        m_sc, l_sc, acc_sc = refs[i], refs[i + 1], refs[i + 2]
        _flash_body(q_ref, k_ref, v_ref, mask_ref, o_ref, qs_sc, m_sc, l_sc, acc_sc,
                    scale=scale, kv_len=kv_len, bf16_exp=bf16_exp)
    return kernel


def _hw_info():
    """(vmem_capacity_bytes, supports_bf16_eup, multi_tensorcore, is_v5e)."""
    vmem_cap = 64 * 1024 * 1024
    kind = ""
    try:
        vmem_cap = int(pltpu.get_tpu_info().vmem_capacity_bytes)
    except Exception:
        pass
    try:
        kind = jax.devices()[0].device_kind.lower()
    except Exception:
        pass
    old_gen = any(t in kind for t in ("v2", "v3", "v4", "v5"))
    bf16_eup = bool(kind) and not old_gen                       # v6e / v7x and newer
    multi_tc = any(t in kind for t in ("v4", "v5p", "v7", "tpu7"))  # 2 TCs per chip
    is_v5e = ("v5" in kind) and ("v5p" not in kind)
    return vmem_cap, bf16_eup, multi_tc, is_v5e


def _pick_tile(n, pref, *, lane_aligned):
    """Return (tile, padded_n): tile divides padded_n >= n, and the block is legal."""
    pref = max(int(pref), 8)
    if n <= pref:
        return n, n                       # full-extent block: always legal, no pad
    step = 128 if lane_aligned else 8
    t = max(step, (pref // step) * step)
    while t >= 128:                       # look for an aligned divisor (no padding)
        if n % t == 0:
            return t, n
        t -= step
    t = max(128, (pref // 128) * 128)     # no divisor: zero-pad to a tile multiple
    return t, ((n + t - 1) // t) * t


def _pad_to(x, axis, new_len):
    pad = new_len - x.shape[axis]
    if pad <= 0:
        return x
    widths = [(0, 0)] * x.ndim
    widths[axis] = (0, pad)
    return jnp.pad(x, widths)


def scaled_dot_product_attention(Q, K, V, scale=None, mask=None,
                                 block_q=None, block_k=None):
    """Pallas flash-attention implementation of Scaled_Dot_Product_Attention.forward.

    Q: [B, Lq, D], K: [B, Lk, D], V: [B, Lk, Dv]; optional float `scale`,
    optional mask [B, Lq, Lk] MULTIPLIED into the logits (module semantics, not
    additive -inf masking).  Pass 0/1 masks as bool/int8 to minimize HBM traffic.
    Returns context: [B, Lq, Dv].
    """
    B, Lq, D = Q.shape
    Bk, Lk, Dk = K.shape
    Bv, Lv, Dv = V.shape
    assert D == Dk and Lk == Lv and B == Bk == Bv
    if mask is not None:
        assert mask.shape == (B, Lq, Lk)

    scale_f = float(scale) if scale else None   # match the module's `if scale:`

    vmem_cap, bf16_eup, multi_tc, is_v5e = _hw_info()

    # Big tiles by default on every generation (incl. v7x's 64 MiB VMEM): at
    # tq=tk=512 the double-buffered tiles + f32 scratch + s/p temporaries are only a
    # few MiB, and larger q tiles minimize the K/V refetch factor.
    # (On v6e/v7x prefer block_k >= 256 if overriding, to keep the 256-wide MXU fed.)
    tq_pref = block_q if block_q is not None else 512
    tk_pref = block_k if block_k is not None else 512

    tq, Lq_pad = _pick_tile(Lq, tq_pref, lane_aligned=False)
    tk, Lk_pad = _pick_tile(Lk, tk_pref, lane_aligned=True)

    # Megacore occupancy on 2-TensorCore parts: make sure B * n_q_tiles >= 2.
    if multi_tc and B * (Lq_pad // tq) < 2 and Lq >= 256:
        tq = (((Lq + 1) // 2) + 127) // 128 * 128
        Lq_pad = ((Lq + tq - 1) // tq) * tq

    n_q_tiles = Lq_pad // tq
    n_kv_tiles = Lk_pad // tk
    kv_len = Lk if Lk_pad != Lk else None

    # Mask storage: bool -> int8 (kernel casts to f32 at the multiply; semantics kept).
    if mask is not None and mask.dtype == jnp.bool_:
        mask = mask.astype(jnp.int8)

    Qp = _pad_to(Q, 1, Lq_pad)
    Kp = _pad_to(K, 1, Lk_pad)
    Vp = _pad_to(V, 1, Lk_pad)
    maskp = None
    if mask is not None:
        maskp = _pad_to(_pad_to(mask, 1, Lq_pad), 2, Lk_pad)

    bf16_exp = (bf16_eup and Q.dtype == jnp.bfloat16
                and K.dtype == jnp.bfloat16 and V.dtype == jnp.bfloat16)

    # v5e only: triple-buffer the streamed operands (lowest HBM BW, ample VMEM).
    kv_depth = 3 if (is_v5e and n_kv_tiles >= 3) else None

    def _spec(shape, index_map, depth=None):
        if depth is not None:
            try:
                return pl.BlockSpec(shape, index_map, pipeline_mode=pl.Buffered(depth))
            except Exception:
                pass
        return pl.BlockSpec(shape, index_map)

    q_spec = pl.BlockSpec((None, tq, D), lambda b, qi, ki: (b, qi, 0))
    k_spec = _spec((None, tk, D), lambda b, qi, ki: (b, ki, 0), kv_depth)
    v_spec = _spec((None, tk, Dv), lambda b, qi, ki: (b, ki, 0), kv_depth)
    o_spec = pl.BlockSpec((None, tq, Dv), lambda b, qi, ki: (b, qi, 0))

    in_specs = [q_spec, k_spec, v_spec]
    args = [Qp, Kp, Vp]
    if maskp is not None:
        in_specs.append(_spec((None, tq, tk), lambda b, qi, ki: (b, qi, ki), kv_depth))
        args.append(maskp)

    scratch_shapes = []
    if scale_f is not None:
        scratch_shapes.append(pltpu.VMEM((tq, D), Q.dtype))   # scaled Q, once per q tile
    scratch_shapes += [
        pltpu.VMEM((tq, 128), jnp.float32),   # running max (lane-dense, replicated)
        pltpu.VMEM((tq, 128), jnp.float32),   # running sum (lane-dense, replicated)
        pltpu.VMEM((tq, Dv), jnp.float32),    # output accumulator
    ]

    kernel = _make_kernel(has_mask=maskp is not None, has_scale=scale_f is not None,
                          scale=scale_f, kv_len=kv_len, bf16_exp=bf16_exp)

    isz = lambda a: jnp.dtype(a.dtype).itemsize
    # K/V are re-streamed once per q tile; Q, mask and the output are touched once.
    flops = 2 * B * Lq_pad * Lk_pad * (D + Dv)
    transcendentals = B * Lq_pad * Lk_pad
    bytes_accessed = (Qp.size * isz(Qp)
                      + n_q_tiles * (Kp.size * isz(Kp) + Vp.size * isz(Vp))
                      + B * Lq_pad * Dv * isz(Q))
    if maskp is not None:
        bytes_accessed += maskp.size * isz(maskp)
    cost = pl.CostEstimate(flops=int(flops), transcendentals=int(transcendentals),
                           bytes_accessed=int(bytes_accessed))

    # VMEM budget: actual tile footprint (with chosen buffer depths) + f32 scratch
    # + (tq, tk) s/p temporaries, capped at 75% of the detected capacity.
    depth = kv_depth if kv_depth is not None else 2
    need = (2 * tq * D * isz(Q)
            + depth * tk * D * isz(K) + depth * tk * Dv * isz(V)
            + 2 * tq * Dv * isz(Q))
    if maskp is not None:
        need += depth * tq * tk * isz(maskp)
    need += 4 * (2 * tq * 128 + tq * Dv)        # f32 running stats + accumulator
    if scale_f is not None:
        need += tq * D * isz(Q)
    need += 2 * tq * tk * 4                     # s / p f32 temporaries
    vmem_limit = int(min(0.75 * vmem_cap, max(2 * need + (8 << 20), 32 << 20)))

    out = pl.pallas_call(
        kernel,
        out_shape=jax.ShapeDtypeStruct((B, Lq_pad, Dv), Q.dtype),
        grid_spec=pltpu.PrefetchScalarGridSpec(
            num_scalar_prefetch=0,
            grid=(B, n_q_tiles, n_kv_tiles),
            in_specs=in_specs,
            out_specs=o_spec,
            scratch_shapes=scratch_shapes,
        ),
        compiler_params=pltpu.CompilerParams(
            dimension_semantics=("parallel", "parallel", "arbitrary"),
            vmem_limit_bytes=vmem_limit,
        ),
        cost_estimate=cost,
    )(*args)

    if Lq_pad != Lq:
        out = out[:, :Lq, :]
    return out


def _reference(Q, K, V, scale=None, mask=None):
    attn = jnp.einsum("bqd,bkd->bqk", Q, K)
    if scale:
        attn = attn * scale
    if mask is not None:
        attn = attn * mask
    attn = jax.nn.softmax(attn, axis=-1)
    return jnp.einsum("bqk,bkd->bqd", attn, V)


if __name__ == "__main__":
    keys = jax.random.split(jax.random.PRNGKey(0), 12)

    # --- 1) small f32 test (module's [batch, len, dim] convention) ---
    B, Lq, Lk, D, Dv = 2, 8, 8, 32, 32
    Q = jax.random.normal(keys[0], (B, Lq, D), dtype=jnp.float32)
    K = jax.random.normal(keys[1], (B, Lk, D), dtype=jnp.float32)
    V = jax.random.normal(keys[2], (B, Lk, Dv), dtype=jnp.float32)
    scale = 1.0 / math.sqrt(D)
    mask = (jax.random.uniform(keys[3], (B, Lq, Lk)) > 0.3).astype(jnp.float32)

    out = jax.block_until_ready(scaled_dot_product_attention(Q, K, V, scale=scale))
    ref = _reference(Q, K, V, scale=scale)
    assert jnp.allclose(out, ref, atol=1e-2, rtol=1e-2), "mismatch (no mask)"

    out_m = jax.block_until_ready(
        scaled_dot_product_attention(Q, K, V, scale=scale, mask=mask))
    ref_m = _reference(Q, K, V, scale=scale, mask=mask)
    assert jnp.allclose(out_m, ref_m, atol=1e-2, rtol=1e-2), "mismatch (mask)"

    # --- 2) tiled online-softmax path: bf16 operands, multi-step kv loop, int8 mask ---
    B2, Lq2, Lk2, D2, Dv2 = 2, 256, 512, 64, 64
    Q2 = jax.random.normal(keys[4], (B2, Lq2, D2), dtype=jnp.bfloat16)
    K2 = jax.random.normal(keys[5], (B2, Lk2, D2), dtype=jnp.bfloat16)
    V2 = jax.random.normal(keys[6], (B2, Lk2, Dv2), dtype=jnp.bfloat16)
    mask2 = (jax.random.uniform(keys[7], (B2, Lq2, Lk2)) > 0.3).astype(jnp.int8)
    scale2 = 1.0 / math.sqrt(D2)

    out2 = jax.block_until_ready(
        scaled_dot_product_attention(Q2, K2, V2, scale=scale2, mask=mask2,
                                     block_q=128, block_k=128))
    ref2 = _reference(Q2.astype(jnp.float32), K2.astype(jnp.float32),
                      V2.astype(jnp.float32), scale=scale2,
                      mask=mask2.astype(jnp.float32))
    # bf16 operands + (on v6e/v7x) bf16 exp: allow a slightly looser tolerance.
    assert jnp.allclose(out2.astype(jnp.float32), ref2, atol=3e-2, rtol=3e-2), \
        "mismatch (tiled bf16)"

    # --- 3) non-divisible lengths: wrapper padding + in-kernel kv guard, bool mask ---
    B3, Lq3, Lk3, D3, Dv3 = 1, 200, 600, 64, 64
    Q3 = jax.random.normal(keys[8], (B3, Lq3, D3), dtype=jnp.float32)
    K3 = jax.random.normal(keys[9], (B3, Lk3, D3), dtype=jnp.float32)
    V3 = jax.random.normal(keys[10], (B3, Lk3, Dv3), dtype=jnp.float32)
    mask3 = jax.random.uniform(keys[11], (B3, Lq3, Lk3)) > 0.3   # bool -> int8 inside
    scale3 = 1.0 / math.sqrt(D3)

    out3 = jax.block_until_ready(
        scaled_dot_product_attention(Q3, K3, V3, scale=scale3, mask=mask3,
                                     block_q=128, block_k=256))
    ref3 = _reference(Q3, K3, V3, scale=scale3, mask=mask3.astype(jnp.float32))
    assert jnp.allclose(out3, ref3, atol=1e-2, rtol=1e-2), "mismatch (padded)"

    print("KERNEL_OK")
</pallas_src>

<mosaic_0001>
module attributes {stable_mosaic.version = 11 : i64} {
  func.func @kernel(%arg0: i32, %arg1: i32, %arg2: i32, %arg3: memref<1x8x32xf32, #tpu.memory_space<vmem>>, %arg4: memref<1x8x32xf32, #tpu.memory_space<vmem>>, %arg5: memref<1x8x32xf32, #tpu.memory_space<vmem>>, %arg6: memref<1x8x32xf32, #tpu.memory_space<vmem>>, %arg7: memref<8x32xf32, #tpu.memory_space<vmem>>, %arg8: memref<8x128xf32, #tpu.memory_space<vmem>>, %arg9: memref<8x128xf32, #tpu.memory_space<vmem>>, %arg10: memref<8x32xf32, #tpu.memory_space<vmem>>) attributes {dimension_semantics = [#tpu.dimension_semantics<parallel>, #tpu.dimension_semantics<parallel>, #tpu.dimension_semantics<arbitrary>], iteration_bounds = array<i64: 2, 1, 1>, scalar_prefetch = 0 : i64, scratch_operands = 4 : i64, tpu.core_type = #tpu.core_type<tc>, window_params = [{transform_indices = @transform_0, window_bounds = array<i64: 1, 8, 32>}, {transform_indices = @transform_1, window_bounds = array<i64: 1, 8, 32>}, {transform_indices = @transform_2, window_bounds = array<i64: 1, 8, 32>}, {transform_indices = @transform_3, window_bounds = array<i64: 1, 8, 32>}]} {
    %c0_i32 = arith.constant 0 : i32
    %0 = arith.cmpi eq, %arg2, %c0_i32 : i32
    %1 = arith.extui %0 : i1 to i32
    %c0_i32_0 = arith.constant 0 : i32
    %2 = arith.cmpi ne, %1, %c0_i32_0 : i32
    scf.if %2 {
      %cst_25 = arith.constant 0xFF800000 : f32
      %40 = vector.broadcast %cst_25 : f32 to vector<8x128xf32>
      %c0_26 = arith.constant 0 : index
      %c0_27 = arith.constant 0 : index
      %41 = vector.load %arg8[%c0_26, %c0_27] : memref<8x128xf32, #tpu.memory_space<vmem>>, vector<8x128xf32>
      tpu.vector_store %arg8[%c0_26, %c0_27], %40 {strides = array<i32>} : memref<8x128xf32, #tpu.memory_space<vmem>>, vector<8x128xf32>,
      %cst_28 = arith.constant 0.000000e+00 : f32
      %42 = vector.broadcast %cst_28 : f32 to vector<8x128xf32>
      %c0_29 = arith.constant 0 : index
      %c0_30 = arith.constant 0 : index
      %43 = vector.load %arg9[%c0_29, %c0_30] : memref<8x128xf32, #tpu.memory_space<vmem>>, vector<8x128xf32>
      tpu.vector_store %arg9[%c0_29, %c0_30], %42 {strides = array<i32>} : memref<8x128xf32, #tpu.memory_space<vmem>>, vector<8x128xf32>,
      %cst_31 = arith.constant 0.000000e+00 : f32
      %44 = vector.broadcast %cst_31 : f32 to vector<8x32xf32>
      %c0_32 = arith.constant 0 : index
      %c0_33 = arith.constant 0 : index
      %45 = vector.load %arg10[%c0_32, %c0_33] : memref<8x32xf32, #tpu.memory_space<vmem>>, vector<8x32xf32>
      tpu.vector_store %arg10[%c0_32, %c0_33], %44 {strides = array<i32>} : memref<8x32xf32, #tpu.memory_space<vmem>>, vector<8x32xf32>,
      %c0_34 = arith.constant 0 : index
      %c0_35 = arith.constant 0 : index
      %c0_36 = arith.constant 0 : index
      %46 = vector.load %arg3[%c0_34, %c0_35, %c0_36] : memref<1x8x32xf32, #tpu.memory_space<vmem>>, vector<1x8x32xf32>
      %47 = vector.shape_cast %46 : vector<1x8x32xf32> to vector<8x32xf32>
      %cst_37 = arith.constant 0.176776692 : f32
      %48 = vector.broadcast %cst_37 : f32 to vector<8x32xf32>
      %49 = arith.mulf %47, %48 : vector<8x32xf32>
      %c0_38 = arith.constant 0 : index
      %c0_39 = arith.constant 0 : index
      %50 = vector.load %arg7[%c0_38, %c0_39] : memref<8x32xf32, #tpu.memory_space<vmem>>, vector<8x32xf32>
      tpu.vector_store %arg7[%c0_38, %c0_39], %49 {strides = array<i32>} : memref<8x32xf32, #tpu.memory_space<vmem>>, vector<8x32xf32>,
    } else {
    }
    %c0 = arith.constant 0 : index
    %c0_1 = arith.constant 0 : index
    %3 = vector.load %arg7[%c0, %c0_1] : memref<8x32xf32, #tpu.memory_space<vmem>>, vector<8x32xf32>
    %c0_2 = arith.constant 0 : index
    %c0_3 = arith.constant 0 : index
    %c0_4 = arith.constant 0 : index
    %4 = vector.load %arg4[%c0_2, %c0_3, %c0_4] : memref<1x8x32xf32, #tpu.memory_space<vmem>>, vector<1x8x32xf32>
    %5 = vector.shape_cast %4 : vector<1x8x32xf32> to vector<8x32xf32>
    %cst = arith.constant dense<0.000000e+00> : vector<8x8xf32>
    %6 = tpu.matmul %3, %5, %cst {dimension_numbers = #tpu.dot_dimension_numbers<[1], [1], [0], [0], [0, 0, 1, 0], [], []>} : vector<8x32xf32>, vector<8x32xf32>, vector<8x8xf32> -> vector<8x8xf32>
    %c0_5 = arith.constant 0 : index
    %c0_6 = arith.constant 0 : index
    %7 = vector.load %arg8[%c0_5, %c0_6] : memref<8x128xf32, #tpu.memory_space<vmem>>, vector<8x128xf32>
    %cst_7 = arith.constant dense<0xFF800000> : vector<8xf32>
    %8 = vector.multi_reduction <maximumf>, %6, %cst_7 [1] : vector<8x8xf32> to vector<8xf32>
    %9 = vector.shape_cast %8 : vector<8xf32> to vector<8x1xf32>
    %10 = vector.broadcast %9 : vector<8x1xf32> to vector<8x128xf32>
    %11 = arith.maximumf %7, %10 : vector<8x128xf32>
    %12 = arith.subf %7, %11 : vector<8x128xf32>
    %13 = math.exp %12 : vector<8x128xf32>
    %14 = vector.extract_strided_slice %11 {offsets = [0, 0], sizes = [8, 1], strides = [1, 1]} : vector<8x128xf32> to vector<8x1xf32>
    %15 = vector.shape_cast %14 : vector<8x1xf32> to vector<8x1xf32>
    %16 = vector.broadcast %15 : vector<8x1xf32> to vector<8x8xf32>
    %17 = arith.subf %6, %16 : vector<8x8xf32>
    %18 = math.exp %17 : vector<8x8xf32>
    %c0_8 = arith.constant 0 : index
    %c0_9 = arith.constant 0 : index
    %19 = vector.load %arg9[%c0_8, %c0_9] : memref<8x128xf32, #tpu.memory_space<vmem>>, vector<8x128xf32>
    %20 = arith.mulf %13, %19 : vector<8x128xf32>
    %cst_10 = arith.constant dense<0.000000e+00> : vector<8xf32>
    %21 = vector.multi_reduction <add>, %18, %cst_10 [1] : vector<8x8xf32> to vector<8xf32>
    %22 = vector.shape_cast %21 : vector<8xf32> to vector<8x1xf32>
    %23 = vector.broadcast %22 : vector<8x1xf32> to vector<8x128xf32>
    %24 = arith.addf %20, %23 : vector<8x128xf32>
    %c0_11 = arith.constant 0 : index
    %c0_12 = arith.constant 0 : index
    %25 = vector.load %arg9[%c0_11, %c0_12] : memref<8x128xf32, #tpu.memory_space<vmem>>, vector<8x128xf32>
    tpu.vector_store %arg9[%c0_11, %c0_12], %24 {strides = array<i32>} : memref<8x128xf32, #tpu.memory_space<vmem>>, vector<8x128xf32>,
    %26 = vector.extract_strided_slice %13 {offsets = [0, 0], sizes = [8, 1], strides = [1, 1]} : vector<8x128xf32> to vector<8x1xf32>
    %27 = vector.shape_cast %26 : vector<8x1xf32> to vector<8x1xf32>
    %28 = vector.broadcast %27 : vector<8x1xf32> to vector<8x32xf32>
    %c0_13 = arith.constant 0 : index
    %c0_14 = arith.constant 0 : index
    %29 = vector.load %arg10[%c0_13, %c0_14] : memref<8x32xf32, #tpu.memory_space<vmem>>, vector<8x32xf32>
    %30 = arith.mulf %28, %29 : vector<8x32xf32>
    %c0_15 = arith.constant 0 : index
    %c0_16 = arith.constant 0 : index
    %c0_17 = arith.constant 0 : index
    %31 = vector.load %arg5[%c0_15, %c0_16, %c0_17] : memref<1x8x32xf32, #tpu.memory_space<vmem>>, vector<1x8x32xf32>
    %32 = vector.shape_cast %31 : vector<1x8x32xf32> to vector<8x32xf32>
    %cst_18 = arith.constant dense<0.000000e+00> : vector<8x32xf32>
    %33 = tpu.matmul %18, %32, %cst_18 {dimension_numbers = #tpu.dot_dimension_numbers<[1], [0], [0], [1], [0, 0, 1, 1], [], []>} : vector<8x8xf32>, vector<8x32xf32>, vector<8x32xf32> -> vector<8x32xf32>
    %34 = arith.addf %30, %33 : vector<8x32xf32>
    %c0_19 = arith.constant 0 : index
    %c0_20 = arith.constant 0 : index
    %35 = vector.load %arg10[%c0_19, %c0_20] : memref<8x32xf32, #tpu.memory_space<vmem>>, vector<8x32xf32>
    tpu.vector_store %arg10[%c0_19, %c0_20], %34 {strides = array<i32>} : memref<8x32xf32, #tpu.memory_space<vmem>>, vector<8x32xf32>,
    %c0_21 = arith.constant 0 : index
    %c0_22 = arith.constant 0 : index
    %36 = vector.load %arg8[%c0_21, %c0_22] : memref<8x128xf32, #tpu.memory_space<vmem>>, vector<8x128xf32>
    tpu.vector_store %arg8[%c0_21, %c0_22], %11 {strides = array<i32>} : memref<8x128xf32, #tpu.memory_space<vmem>>, vector<8x128xf32>,
    %c0_i32_23 = arith.constant 0 : i32
    %37 = arith.cmpi eq, %arg2, %c0_i32_23 : i32
    %38 = arith.extui %37 : i1 to i32
    %c0_i32_24 = arith.constant 0 : i32
    %39 = arith.cmpi ne, %38, %c0_i32_24 : i32
    scf.if %39 {
      %c0_25 = arith.constant 0 : index
      %c0_26 = arith.constant 0 : index
      %40 = vector.load %arg9[%c0_25, %c0_26] : memref<8x128xf32, #tpu.memory_space<vmem>>, vector<8x128xf32>
      %41 = tpu.reciprocal %40 : vector<8x128xf32> -> vector<8x128xf32>
      %c0_27 = arith.constant 0 : index
      %c0_28 = arith.constant 0 : index
      %42 = vector.load %arg10[%c0_27, %c0_28] : memref<8x32xf32, #tpu.memory_space<vmem>>, vector<8x32xf32>
      %43 = vector.extract_strided_slice %41 {offsets = [0, 0], sizes = [8, 1], strides = [1, 1]} : vector<8x128xf32> to vector<8x1xf32>
      %44 = vector.shape_cast %43 : vector<8x1xf32> to vector<8x1xf32>
      %45 = vector.broadcast %44 : vector<8x1xf32> to vector<8x32xf32>
      %46 = arith.mulf %42, %45 : vector<8x32xf32>
      %c0_29 = arith.constant 0 : index
      %c0_30 = arith.constant 0 : index
      %c0_31 = arith.constant 0 : index
      %47 = vector.load %arg6[%c0_29, %c0_30, %c0_31] : memref<1x8x32xf32, #tpu.memory_space<vmem>>, vector<1x8x32xf32>
      %48 = vector.shape_cast %47 : vector<1x8x32xf32> to vector<8x32xf32>
      %49 = vector.shape_cast %46 : vector<8x32xf32> to vector<1x8x32xf32>
      tpu.vector_store %arg6[%c0_29, %c0_30, %c0_31], %49 {strides = array<i32>} : memref<1x8x32xf32, #tpu.memory_space<vmem>>, vector<1x8x32xf32>,
    } else {
    }
    return
  }
  func.func @transform_0(%arg0: i32, %arg1: i32, %arg2: i32) -> (i32, i32, i32) {
    %c0_i32 = arith.constant 0 : i32
    %c0_i32_0 = arith.constant 0 : i32
    return %arg0, %arg1, %c0_i32 : i32, i32, i32
  }
  func.func @transform_1(%arg0: i32, %arg1: i32, %arg2: i32) -> (i32, i32, i32) {
    %c0_i32 = arith.constant 0 : i32
    %c0_i32_0 = arith.constant 0 : i32
    return %arg0, %arg2, %c0_i32 : i32, i32, i32
  }
  func.func @transform_2(%arg0: i32, %arg1: i32, %arg2: i32) -> (i32, i32, i32) {
    %c0_i32 = arith.constant 0 : i32
    %c0_i32_0 = arith.constant 0 : i32
    return %arg0, %arg2, %c0_i32 : i32, i32, i32
  }
  func.func @transform_3(%arg0: i32, %arg1: i32, %arg2: i32) -> (i32, i32, i32) {
    %c0_i32 = arith.constant 0 : i32
    %c0_i32_0 = arith.constant 0 : i32
    return %arg0, %arg1, %c0_i32 : i32, i32, i32
  }
}

</mosaic_0001>

<llo_original>
// kernel: tpu_custom_call.1
$region0: #{tpu_custom_call.1}
  #allocation0 [shape = 'u32[]', space=smem, size = 0x4, offset = 0x4, fixed_abs, tag = 'smem constant byte address 0x4 - core index']
  #allocation1 [shape = 'u32[72,128]{1,0:T(1,128)}', space=vmem, size = 0x9000, scoped, tag = 'internal scratch']
  #allocation2 [shape = 'f32[8,32]{1,0:T(8,128)}', space=vmem, size = 0x1000, scoped, tag = 'scratch operand']
  #allocation3 [shape = 'f32[8,128]{1,0:T(8,128)}', space=vmem, size = 0x1000, scoped, tag = 'scratch operand']
  #allocation4 [shape = 'f32[8,128]{1,0:T(8,128)}', space=vmem, size = 0x1000, scoped, tag = 'scratch operand']
  #allocation5 [shape = 'f32[8,32]{1,0:T(8,128)}', space=vmem, size = 0x1000, scoped, tag = 'scratch operand']
  %s0 = inlined_call_operand.hbm [shape: f32[2,8,32], index: 0, kind: input, shape index: {}]
  %s1 = inlined_call_operand.hbm [shape: f32[2,8,32], index: 1, kind: input, shape index: {}]
  %s2 = inlined_call_operand.hbm [shape: f32[2,8,32], index: 2, kind: input, shape index: {}]
  %s3 = inlined_call_operand.hbm [shape: f32[2,8,32], index: 3, kind: output, shape index: {}]
  %s4 = sld [smem:[#allocation0]]
  $region65: #{tpu_custom_call.1} parent=0
    _
  %s6 = ssub.s32 1, %s4
  %s7 = scalar_select 0, %s6, %s4
  $region1: #{tpu_custom_call.1} parent=0
    #allocation6 [shape = 'u8[8192]{0}', space=vmem, size = 0x2000, scoped, tag = 'input window, operand 0']
    #allocation7 [shape = 's32[2]{0}', space=sflag, size = 0x8, scoped, tag = 'scoped memory for tpu_custom_call.1']
    #allocation8 [shape = 's32[2]{0}', space=sflag, size = 0x8, scoped, tag = 'scoped memory for tpu_custom_call.1']
    #allocation9 [shape = 'u8[8192]{0}', space=vmem, size = 0x2000, scoped, tag = 'input window, operand 1']
    #allocation10 [shape = 's32[2]{0}', space=sflag, size = 0x8, scoped, tag = 'scoped memory for tpu_custom_call.1']
    #allocation11 [shape = 'u8[8192]{0}', space=vmem, size = 0x2000, scoped, tag = 'input window, operand 2']
    #allocation12 [shape = 'u8[8192]{0}', space=vmem, size = 0x2000, scoped, tag = 'output window, operand 0']
    %8 = vsyncpa [#allocation7], 0
    %s9 = scalar_lea.sflag [#allocation7], 1
    %10 = vsyncpa %s9, 0
    %11 = vsyncpa [#allocation10], 0
    %s12 = scalar_lea.sflag [#allocation10], 1
    %13 = vsyncpa %s12, 0
    %14 = vsyncpa [#allocation8], 0
    %s15 = scalar_lea.sflag [#allocation8], 1
    %16 = vsyncpa %s15, 0
    loop: start=0, step=1, limit=4
    $region2: #{tpu_custom_call.1} parent=1 // loop_pre_header
      _
    $region3: #{tpu_custom_call.1} parent=1 // loop_header
      %s18 = sphi 0, %s22
      %p19 = scmp.ge.s32.totalorder %s18, 4
      %s25 = sphi 0, %s44
      %s26 = sphi 0, %s40
      %s27 = sphi 0, %s36
      %s28 = sphi 0, %s25
      %s29 = sphi 0, %s26
      %s30 = sphi 0, %s27
      %s31 = sphi 0, %s28
      %s32 = sphi 0, %s29
      %s33 = sphi 0, %s30
      %s49 = sphi 0, %s51
      %s52 = sphi 0, %s49
      %s53 = sphi 0, %s52
      %s69 = sphi 0, %s53
      %s77 = sphi 0, %s79
      %s80 = sphi 0, %s77
      %s81 = sphi 0, %s80
      %s97 = sphi 0, %s81
      %s105 = sphi 0, %s107
      %s108 = sphi 0, %s105
      %s109 = sphi 0, %s108
      %s125 = sphi 0, %s109
      %s133 = sphi 0, %s135
      %s136 = sphi 0, %s133
      %s137 = sphi 0, %s136
      %s153 = sphi 0, %s137
    $region4: #{tpu_custom_call.1} parent=1 // loop_header_branch
      %21 = sbr.rel (%p19) target = $region8
    $region5: #{tpu_custom_call.1} parent=1 // loop_body
      %s23 = ssub.s32 %s18, 1
      %s24 = ssub.s32 %s18, 2
      %s34 = sadd.s32 1, %s27
      %p35 = scmp.ge.s32.totalorder %s34, 1
      %s36 = scalar_select %p35, 0, %s34
      %s37 = sadd.s32 1, %s26
      %s38 = scalar_select %p35, %s37, %s26
      %p39 = scmp.ge.s32.totalorder %s38, 1
      %s40 = scalar_select %p39, 0, %s38
      %s41 = sadd.s32 1, %s25
      %s42 = scalar_select %p39, %s41, %s25
      %p43 = scmp.ge.s32.totalorder %s42, 2
      %s44 = scalar_select %p43, 0, %s42
      %s45 = ssub.s32 %s25, %s44
      %s46 = ssub.s32 %s26, %s40
      %s47 = sor.u32 %s45, %s46
      %p48 = scmp.eq.s32.totalorder %s47, 0
      %s50 = sadd.s32 %s49, 1
      %s51 = scalar_select %p48, %s49, %s50
      %p54 = pneg %p48
      %p55 = scmp.eq.s32.totalorder %s18, 1
      %p56 = por %p54, %p55
      %p57 = scmp.ne.s32.totalorder %s49, %s52
      %p58 = scmp.eq.s32.totalorder %s18, 0
      %p59 = por %p57, %p58
      %p60 = scmp.ne.s32.totalorder %s49, %s52
      %p61 = scmp.eq.s32.totalorder %s23, 1
      %p62 = por %p60, %p61
      %p63 = scmp.ne.s32.totalorder %s52, %s53
      %p64 = scmp.eq.s32.totalorder %s23, 0
      %p65 = por %p63, %p64
      %p66 = scmp.ne.s32.totalorder %s52, %s53
      %p67 = scmp.eq.s32.totalorder %s24, 1
      %p68 = por %p66, %p67
      %p70 = scmp.ne.s32.totalorder %s53, %s69
      %p71 = scmp.eq.s32.totalorder %s24, 0
      %p72 = por %p70, %p71
      %s73 = ssub.s32 %s25, %s44
      %s74 = ssub.s32 %s27, %s36
      %s75 = sor.u32 %s73, %s74
      %p76 = scmp.eq.s32.totalorder %s75, 0
      %s78 = sadd.s32 %s77, 1
      %s79 = scalar_select %p76, %s77, %s78
      %p82 = pneg %p76
      %p83 = scmp.eq.s32.totalorder %s18, 1
      %p84 = por %p82, %p83
      %p85 = scmp.ne.s32.totalorder %s77, %s80
      %p86 = scmp.eq.s32.totalorder %s18, 0
      %p87 = por %p85, %p86
      %p88 = scmp.ne.s32.totalorder %s77, %s80
      %p89 = scmp.eq.s32.totalorder %s23, 1
      %p90 = por %p88, %p89
      %p91 = scmp.ne.s32.totalorder %s80, %s81
      %p92 = scmp.eq.s32.totalorder %s23, 0
      %p93 = por %p91, %p92
      %p94 = scmp.ne.s32.totalorder %s80, %s81
      %p95 = scmp.eq.s32.totalorder %s24, 1
      %p96 = por %p94, %p95
      %p98 = scmp.ne.s32.totalorder %s81, %s97
      %p99 = scmp.eq.s32.totalorder %s24, 0
      %p100 = por %p98, %p99
      %s101 = ssub.s32 %s25, %s44
      %s102 = ssub.s32 %s27, %s36
      %s103 = sor.u32 %s101, %s102
      %p104 = scmp.eq.s32.totalorder %s103, 0
      %s106 = sadd.s32 %s105, 1
      %s107 = scalar_select %p104, %s105, %s106
      %p110 = pneg %p104
      %p111 = scmp.eq.s32.totalorder %s18, 1
      %p112 = por %p110, %p111
      %p113 = scmp.ne.s32.totalorder %s105, %s108
      %p114 = scmp.eq.s32.totalorder %s18, 0
      %p115 = por %p113, %p114
      %p116 = scmp.ne.s32.totalorder %s105, %s108
      %p117 = scmp.eq.s32.totalorder %s23, 1
      %p118 = por %p116, %p117
      %p119 = scmp.ne.s32.totalorder %s108, %s109
      %p120 = scmp.eq.s32.totalorder %s23, 0
      %p121 = por %p119, %p120
      %p122 = scmp.ne.s32.totalorder %s108, %s109
      %p123 = scmp.eq.s32.totalorder %s24, 1
      %p124 = por %p122, %p123
      %p126 = scmp.ne.s32.totalorder %s109, %s125
      %p127 = scmp.eq.s32.totalorder %s24, 0
      %p128 = por %p126, %p127
      %s129 = ssub.s32 %s25, %s44
      %s130 = ssub.s32 %s26, %s40
      %s131 = sor.u32 %s129, %s130
      %p132 = scmp.eq.s32.totalorder %s131, 0
      %s134 = sadd.s32 %s133, 1
      %s135 = scalar_select %p132, %s133, %s134
      %p138 = pneg %p132
      %p139 = scmp.eq.s32.totalorder %s18, 1
      %p140 = por %p138, %p139
      %p141 = scmp.ne.s32.totalorder %s133, %s136
      %p142 = scmp.eq.s32.totalorder %s18, 0
      %p143 = por %p141, %p142
      %p144 = scmp.ne.s32.totalorder %s133, %s136
      %p145 = scmp.eq.s32.totalorder %s23, 1
      %p146 = por %p144, %p145
      %p147 = scmp.ne.s32.totalorder %s136, %s137
      %p148 = scmp.eq.s32.totalorder %s23, 0
      %p149 = por %p147, %p148
      %p150 = scmp.ne.s32.totalorder %s136, %s137
      %p151 = scmp.eq.s32.totalorder %s24, 1
      %p152 = por %p150, %p151
      %p154 = scmp.ne.s32.totalorder %s137, %s153
      %p155 = scmp.eq.s32.totalorder %s24, 0
      %p156 = por %p154, %p155
      %p157 = scmp.le.s32.totalorder 1, %s18
      %p158 = scmp.lt.s32.totalorder %s18, 3
      %p159 = pnand %p157, %p158
      %p160 = pneg %p159
      // Predicated region
      $region9: #{tpu_custom_call.1} parent=5 // pred_check
        _
      $region10: #{tpu_custom_call.1} parent=5 // pred_check_branch
        %162 = sbr.rel (%p159) target = $region12
      $region11: #{tpu_custom_call.1} parent=5 // pred_region
        %s163 = ssub.s32 %s18, 1
      $region12: #{tpu_custom_call.1} parent=5 // pred_fallthru
        _
      %p164 = scmp.lt.s32.totalorder %s18, 2
      // Predicated region
      $region13: #{tpu_custom_call.1} parent=5 // pred_check
        %p165 = pneg %p164
      $region14: #{tpu_custom_call.1} parent=5 // pred_check_branch
        %167 = sbr.rel (%p165) target = $region16
      $region15: #{tpu_custom_call.1} parent=5 // pred_region
        // Predicated region
        $region17: #{tpu_custom_call.1} parent=15 // pred_check
          %p168 = pneg %p59
        $region18: #{tpu_custom_call.1} parent=15 // pred_check_branch
          %170 = sbr.rel (%p168) target = $region20
        $region19: #{tpu_custom_call.1} parent=15 // pred_region
          %s171 = sand.u32 %s49, 1
          %s172 = scalar_lea.sflag [#allocation7], %s171
          %s173 = sand.u32 %s49, 1
          %s174 = smul.addr %s173, 8
          %s175 = scalar_lea.vmem [#allocation6], %s174
          %177 = vsyncadd %s172, 0
          %s178 = sadd.s32 %s26, %s25
          %s179 = smul.addr %s178, 8
          %s180 = scalar_lea.hbm %s0, %s179
          %s182 = sshll.u32 %s180, 4
          %s183 = int_to_ptr.hbm [resolvable:$true] %s182
          %s184 = sshll.u32 %s175, 4
          %s185 = int_to_ptr.vmem [resolvable:$true] %s184
          %187 = dma.hbm_to_vmem [thread:$0]  %s183, 128, %s185, %s172
        $region20: #{tpu_custom_call.1} parent=15 // pred_fallthru
          _
        // Predicated region
        $region21: #{tpu_custom_call.1} parent=15 // pred_check
          %p188 = pneg %p87
        $region22: #{tpu_custom_call.1} parent=15 // pred_check_branch
          %190 = sbr.rel (%p188) target = $region24
        $region23: #{tpu_custom_call.1} parent=15 // pred_region
          %s191 = sand.u32 %s18, 1
          %s192 = scalar_lea.sflag [#allocation10], %s191
          %s193 = sand.u32 %s77, 1
          %s194 = smul.addr %s193, 8
          %s195 = scalar_lea.vmem [#allocation9], %s194
          %197 = vsyncadd %s192, 0
          %s198 = sadd.s32 %s27, %s25
          %s199 = smul.addr %s198, 8
          %s200 = scalar_lea.hbm %s1, %s199
          %s202 = sshll.u32 %s200, 4
          %s203 = int_to_ptr.hbm [resolvable:$true] %s202
          %s204 = sshll.u32 %s195, 4
          %s205 = int_to_ptr.vmem [resolvable:$true] %s204
          %207 = dma.hbm_to_vmem [thread:$0]  %s203, 128, %s205, %s192
        $region24: #{tpu_custom_call.1} parent=15 // pred_fallthru
          _
        // Predicated region
        $region25: #{tpu_custom_call.1} parent=15 // pred_check
          %p208 = pneg %p115
        $region26: #{tpu_custom_call.1} parent=15 // pred_check_branch
          %210 = sbr.rel (%p208) target = $region28
        $region27: #{tpu_custom_call.1} parent=15 // pred_region
          %s211 = sand.u32 %s18, 1
          %s212 = scalar_lea.sflag [#allocation10], %s211
          %s213 = sand.u32 %s105, 1
          %s214 = smul.addr %s213, 8
          %s215 = scalar_lea.vmem [#allocation11], %s214
          %217 = vsyncadd %s212, 0
          %s218 = sadd.s32 %s27, %s25
          %s219 = smul.addr %s218, 8
          %s220 = scalar_lea.hbm %s2, %s219
          %s222 = sshll.u32 %s220, 4
          %s223 = int_to_ptr.hbm [resolvable:$true] %s222
          %s224 = sshll.u32 %s215, 4
          %s225 = int_to_ptr.vmem [resolvable:$true] %s224
          %227 = dma.hbm_to_vmem [thread:$0]  %s223, 128, %s225, %s212
        $region28: #{tpu_custom_call.1} parent=15 // pred_fallthru
          _
      $region16: #{tpu_custom_call.1} parent=5 // pred_fallthru
        _
      %p228 = scmp.le.s32.totalorder 1, %s18
      %p229 = scmp.lt.s32.totalorder %s18, 3
      %p230 = pnand %p228, %p229
      %p231 = pneg %p230
      // Predicated region
      $region29: #{tpu_custom_call.1} parent=5 // pred_check
        _
      $region30: #{tpu_custom_call.1} parent=5 // pred_check_branch
        %233 = sbr.rel (%p230) target = $region32
      $region31: #{tpu_custom_call.1} parent=5 // pred_region
        %s234 = ssub.s32 %s18, 1
        %s235 = sand.u32 %s52, 1
        %s236 = scalar_lea.sflag [#allocation7], %s235
        %s237 = sand.u32 %s52, 1
        %s238 = smul.addr %s237, 8
        %s239 = scalar_lea.vmem [#allocation6], %s238
        // Predicated region
        $region33: #{tpu_custom_call.1} parent=31 // pred_check
          %p240 = pneg %p65
        $region34: #{tpu_custom_call.1} parent=31 // pred_check_branch
          %242 = sbr.rel (%p240) target = $region36
        $region35: #{tpu_custom_call.1} parent=31 // pred_region
          %244 = dma.done %s236, 128
        $region36: #{tpu_custom_call.1} parent=31 // pred_fallthru
          _
        %s245 = sand.u32 %s23, 1
        %s246 = scalar_lea.sflag [#allocation10], %s245
        %s247 = sand.u32 %s80, 1
        %s248 = smul.addr %s247, 8
        %s249 = scalar_lea.vmem [#allocation9], %s248
        // Predicated region
        $region37: #{tpu_custom_call.1} parent=31 // pred_check
          %p250 = pneg %p93
        $region38: #{tpu_custom_call.1} parent=31 // pred_check_branch
          %252 = sbr.rel (%p250) target = $region40
        $region39: #{tpu_custom_call.1} parent=31 // pred_region
          %254 = dma.done %s246, 128
        $region40: #{tpu_custom_call.1} parent=31 // pred_fallthru
          _
        %s255 = sand.u32 %s23, 1
        %s256 = scalar_lea.sflag [#allocation10], %s255
        %s257 = sand.u32 %s108, 1
        %s258 = smul.addr %s257, 8
        %s259 = scalar_lea.vmem [#allocation11], %s258
        // Predicated region
        $region41: #{tpu_custom_call.1} parent=31 // pred_check
          %p260 = pneg %p121
        $region42: #{tpu_custom_call.1} parent=31 // pred_check_branch
          %262 = sbr.rel (%p260) target = $region44
        $region43: #{tpu_custom_call.1} parent=31 // pred_region
          %264 = dma.done %s256, 128
        $region44: #{tpu_custom_call.1} parent=31 // pred_fallthru
          _
        %s265 = sand.u32 %s52, 1
        %s266 = scalar_lea.sflag [#allocation7], %s265
        %s267 = sand.u32 %s52, 1
        %s268 = smul.addr %s267, 8
        %s269 = scalar_lea.vmem [#allocation6], %s268
        %p270 = pneg %p65
        %p271 = pneg %p62
        %s272 = sand.u32 %s23, 1
        %s273 = scalar_lea.sflag [#allocation10], %s272
        %s274 = sand.u32 %s80, 1
        %s275 = smul.addr %s274, 8
        %s276 = scalar_lea.vmem [#allocation9], %s275
        %p277 = pneg %p93
        %p278 = pneg %p90
        %s279 = sand.u32 %s23, 1
        %s280 = scalar_lea.sflag [#allocation10], %s279
        %s281 = sand.u32 %s108, 1
        %s282 = smul.addr %s281, 8
        %s283 = scalar_lea.vmem [#allocation11], %s282
        %p284 = pneg %p121
        %p285 = pneg %p118
        %p286 = pneg %p149
        %p287 = pneg %p146
        %s288 = sand.u32 %s136, 1
        %s289 = scalar_lea.sflag [#allocation8], %s288
        %s290 = sand.u32 %s136, 1
        %s291 = smul.addr %s290, 8
        %s292 = scalar_lea.vmem [#allocation12], %s291
        %p293 = scmp.eq.s32.totalorder %s30, 0
        // Predicated region
        $region45: #{tpu_custom_call.1} parent=31 // pred_check
          %p294 = pneg %p293
        $region46: #{tpu_custom_call.1} parent=31 // pred_check_branch
          %296 = sbr.rel (%p294) target = $region48
        $region47: #{tpu_custom_call.1} parent=31 // pred_region
          %297 = vst [vmem:[#allocation3] sm:$0xff] -inf
          %298 = vst [vmem:[#allocation4] sm:$0xff] 0.0
          %vm299 = vcmask 261120
          %300 = vst.msk [vmem:[#allocation5] sm:$0xff] %vm299, 0.0
          %v301 = vld [vmem:[%s239] sm:$0xff]
          %v302 = vmul.f32 %v301, 0.17677669
          %303 = vst.msk [vmem:[#allocation2] sm:$0xff] %vm299, %v302
        $region48: #{tpu_custom_call.1} parent=31 // pred_fallthru
          _
        %v304 = vld [vmem:[#allocation2] sm:$0xff]
        %v305 = vld [vmem:[%s249] sm:$0xff]
        %vm306 = vcmask 261120
        %v308 = vsel %vm306, %v304, 0
        %v311 = vsel %vm306, %v305, 0
        %313 = vmatpush.xpose.msra.mxu0 0.0
        %314 = vmatpush.xpose.msra.mxu0 0.0
        %315 = vmatpush.xpose.msra.mxu0 0.0
        %316 = vmatpush.xpose.msra.mxu0 0.0
        %317 = vmatpush.xpose.msra.mxu0 0.0
        %318 = vmatpush.xpose.msra.mxu0 0.0
        %319 = vmatpush.xpose.msra.mxu0 0.0
        %320 = vmatpush.xpose.msra.mxu0 0.0
        %321 = vmatpush.xpose.msra.mxu0 0.0
        %322 = vmatpush.xpose.msra.mxu0 0.0
        %323 = vmatpush.xpose.msra.mxu0 0.0
        %324 = vmatpush.xpose.msra.mxu0 0.0
        %325 = vmatpush.xpose.msra.mxu0 0.0
        %326 = vmatpush.xpose.msra.mxu0 0.0
        %327 = vmatpush.xpose.msra.mxu0 0.0
        %328 = vmatpush.xpose.msra.mxu0 %v311
        %329 = vmatmul.f32.gmra.mxu0 %v308
        %v330 = vpop.f32.mrf.mxu0
        %v331 = vadd.f32 0.0, %v330
        %332 = vdwg.mxu0
        %v333 = vld [vmem:[#allocation3] sm:$0xff]
        %vm334 = vcmask 64512
        %v335 = vsel %vm334, %v331, -inf
        %336 = vmax.xlane.f32.xlu0 %v335
        %v337 = vpop.xlane.xlu0 %336
        %v338 = vmax.f32 %v333, %v337
        %v339 = vsub.f32 %v333, %v338
        %v340 = vmul.f32 %v339, 1.442695
        %v341 = vpow.pop %v340
        %343 = vset.pattern.permute.xlu0 0
        %344 = vperm.xlu0 %343, %v338
        %v345 = vpop.permute.xlu0 %344
        %v347 = vsub.f32 %v331, %v345
        %v348 = vmul.f32 %v347, 1.442695
        %v349 = vpow.pop %v348
        %v350 = vld [vmem:[#allocation4] sm:$0xff]
        %v351 = vmul.f32 %v341, %v350
        %v352 = vsel %vm334, %v349, 0.0
        %353 = vadd.xlane.f32.xlu0 %v352
        %v354 = vpop.xlane.xlu0 %353
        %v355 = vadd.f32 %v351, %v354
        %356 = vst [vmem:[#allocation4] sm:$0xff] %v355
        %358 = vset.pattern.permute.xlu0 0
        %359 = vperm.xlu0 %358, %v341
        %v360 = vpop.permute.xlu0 %359
        %v362 = vld [vmem:[#allocation5] sm:$0xff]
        %v363 = vmul.f32 %v360, %v362
        %v364 = vld [vmem:[%s259] sm:$0xff]
        %v366 = vsel %vm334, %v349, 0
        %368 = vmatpush.msra.mxu0 0.0
        %369 = vmatpush.msra.mxu0 0.0
        %370 = vmatpush.msra.mxu0 0.0
        %371 = vmatpush.msra.mxu0 0.0
        %372 = vmatpush.msra.mxu0 0.0
        %373 = vmatpush.msra.mxu0 0.0
        %374 = vmatpush.msra.mxu0 0.0
        %375 = vmatpush.msra.mxu0 0.0
        %376 = vmatpush.msra.mxu0 0.0
        %377 = vmatpush.msra.mxu0 0.0
        %378 = vmatpush.msra.mxu0 0.0
        %379 = vmatpush.msra.mxu0 0.0
        %380 = vmatpush.msra.mxu0 0.0
        %381 = vmatpush.msra.mxu0 0.0
        %382 = vmatpush.msra.mxu0 0.0
        %383 = vmatpush.msra.mxu0 %v364
        %384 = vmatmul.f32.gmra.mxu0 %v366
        %v385 = vpop.f32.mrf.mxu0
        %v386 = vadd.f32 0.0, %v385
        %387 = vdwg.mxu0
        %v388 = vadd.f32 %v363, %v386
        %389 = vst.msk [vmem:[#allocation5] sm:$0xff] %vm306, %v388
        %390 = vst [vmem:[#allocation3] sm:$0xff] %v338
        // Predicated region
        $region49: #{tpu_custom_call.1} parent=31 // pred_check
          %p391 = pneg %p293
        $region50: #{tpu_custom_call.1} parent=31 // pred_check_branch
          %393 = sbr.rel (%p391) target = $region52
        $region51: #{tpu_custom_call.1} parent=31 // pred_region
          %v394 = vld [vmem:[#allocation4] sm:$0xff]
          %v395 = vrcp.pop %v394
          %v396 = vmul.f32 %v394, %v395
          %v397 = vsub.f32 1.0, %v396
          %v398 = vmul.f32 %v395, %v397
          %v399 = vadd.f32 %v395, %v398
          %vm400 = vweird.f32 %v394
          %vm401 = vweird.f32 %v395
          %vm402 = vmor %vm400, %vm401
          %v403 = vsel %vm402, %v395, %v399
          %v404 = vand.u32 2147483647, %v394
          %vm405 = vcmp.eq.f32.partialorder %v404, 8.507059e+37
          %v406 = vand.u32 %v394, 2147483648
          %v407 = vor.u32 1.1754944e-38, %v406
          %v408 = vsel %vm405, %v407, %v403
          %v409 = vld [vmem:[#allocation5] sm:$0xff]
          %411 = vset.pattern.permute.xlu0 0
          %412 = vperm.xlu0 %411, %v408
          %v413 = vpop.permute.xlu0 %412
          %v415 = vmul.f32 %v409, %v413
          %416 = vst.msk [vmem:[%s292] sm:$0xff] %vm306, %v415
        $region52: #{tpu_custom_call.1} parent=31 // pred_fallthru
          _
        %s417 = sand.u32 %s136, 1
        %s418 = scalar_lea.sflag [#allocation8], %s417
        %s419 = sand.u32 %s136, 1
        %s420 = smul.addr %s419, 8
        %s421 = scalar_lea.vmem [#allocation12], %s420
        // Predicated region
        $region53: #{tpu_custom_call.1} parent=31 // pred_check
          %p422 = pneg %p146
        $region54: #{tpu_custom_call.1} parent=31 // pred_check_branch
          %424 = sbr.rel (%p422) target = $region56
        $region55: #{tpu_custom_call.1} parent=31 // pred_region
          %426 = vsyncadd %s418, 0
          %s427 = sadd.s32 %s29, %s28
          %s428 = smul.addr %s427, 8
          %s429 = scalar_lea.hbm %s3, %s428
          %s431 = sshll.u32 %s421, 4
          %s432 = int_to_ptr.vmem [resolvable:$true] %s431
          %s433 = sshll.u32 %s429, 4
          %s434 = int_to_ptr.hbm [resolvable:$true] %s433
          %436 = dma.vmem_to_hbm [thread:$0]  %s432, 128, %s434, %s418
        $region56: #{tpu_custom_call.1} parent=31 // pred_fallthru
          _
      $region32: #{tpu_custom_call.1} parent=5 // pred_fallthru
        _
      %p437 = scmp.le.s32.totalorder 2, %s18
      // Predicated region
      $region57: #{tpu_custom_call.1} parent=5 // pred_check
        %p438 = pneg %p437
      $region58: #{tpu_custom_call.1} parent=5 // pred_check_branch
        %440 = sbr.rel (%p438) target = $region60
      $region59: #{tpu_custom_call.1} parent=5 // pred_region
        %s441 = ssub.s32 %s18, 2
        // Predicated region
        $region61: #{tpu_custom_call.1} parent=59 // pred_check
          %p442 = pneg %p152
        $region62: #{tpu_custom_call.1} parent=59 // pred_check_branch
          %444 = sbr.rel (%p442) target = $region64
        $region63: #{tpu_custom_call.1} parent=59 // pred_region
          %s445 = sand.u32 %s137, 1
          %s446 = scalar_lea.sflag [#allocation8], %s445
          %s447 = sand.u32 %s137, 1
          %s448 = smul.addr %s447, 8
          %s449 = scalar_lea.vmem [#allocation12], %s448
          %451 = dma.done %s446, 128
        $region64: #{tpu_custom_call.1} parent=59 // pred_fallthru
          _
      $region60: #{tpu_custom_call.1} parent=5 // pred_fallthru
        _
    $region6: #{tpu_custom_call.1} parent=1 // loop_footer
      %s22 = sadd.s32 1, %s18
    $region7: #{tpu_custom_call.1} parent=1 // loop_footer_branch
      %17 = sbr.rel target = $region3
    $region8: #{tpu_custom_call.1} parent=1 // loop_exit
      _
    %452 = vsyncpa [#allocation7], 1
    %s453 = scalar_lea.sflag [#allocation7], 1
    %454 = vsyncpa %s453, 1
    %455 = vsyncpa [#allocation10], 1
    %s456 = scalar_lea.sflag [#allocation10], 1
    %457 = vsyncpa %s456, 1
    %458 = vsyncpa [#allocation8], 1
    %s459 = scalar_lea.sflag [#allocation8], 1
    %460 = vsyncpa %s459, 1

</llo_original>
